<compile_context>
chip_gen: v7x
topology: tpu7x:2x2x1
jax: 0.10.0
libtpu: 0.0.40
codegen_flags: <defaults>
</compile_context>

<pallas_src>
import functools

import jax
import jax.numpy as jnp
from jax import lax
from jax.experimental import pallas as pl
from jax.experimental.pallas import tpu as pltpu

NEG_INF = -1e30  # large finite negative: no NaNs even under full masking


# --------------------------- QKV projection pre-pass ---------------------------
def qkv_proj_kernel(scale, n_head, x_ref, w_ref, b_ref,
                    q_ref, k_ref, v_ref, kv_ref):
    """Fused qkv projection for one row tile.

    x_ref : (1, tile_t, C) f32 activations
    w_ref : (C, 3C) bf16 fused c_attn weight (in, out);  b_ref: (1, 3C) f32
    q/k/v_ref : (1, nh, tile_t, hs) bf16 head-major outputs (q pre-scaled)
    kv_ref    : (1, tile_t, 2*hs) last-head K|V cache slab (x dtype)
    """
    C = x_ref.shape[2]
    hs = C // n_head
    x = x_ref[0].astype(jnp.bfloat16)                                  # (tq, C)
    qkv = jnp.dot(x, w_ref[...], preferred_element_type=jnp.float32)   # (tq, 3C)
    qkv = qkv + b_ref[...]
    for h in range(n_head):  # static unroll; head routing = static lane slices
        q_ref[0, h] = (qkv[:, h * hs:(h + 1) * hs] * scale).astype(jnp.bfloat16)
        k_ref[0, h] = qkv[:, C + h * hs:C + (h + 1) * hs].astype(jnp.bfloat16)
        v_ref[0, h] = qkv[:, 2 * C + h * hs:2 * C + (h + 1) * hs].astype(jnp.bfloat16)
    last = n_head - 1
    kv_ref[0, :, :hs] = qkv[:, C + last * hs:2 * C].astype(kv_ref.dtype)
    kv_ref[0, :, hs:] = qkv[:, 2 * C + last * hs:3 * C].astype(kv_ref.dtype)


# ------------------------ flash attention + output proj ------------------------
def attn_kernel(n_head, qi_ref, ki_ref,
                q_ref, k_ref, v_ref, wp_ref, bp_ref,
                out_ref,
                m_s, l_s, acc_s, o_s):
    """One lower-triangle (qi, ki) step of flash-style causal MHA.

    qi_ref/ki_ref : scalar-prefetched (n_steps,) int32 tile coordinates (SMEM)
    q/k/v_ref     : (1, nh, tile_t, hs) bf16 pre-projected tiles (q pre-scaled)
    wp_ref        : (C, C) bf16 c_proj weight (in, out);  bp_ref: (1, C) f32
    scratch       : m_s/l_s (nh, tq, 1) f32, acc_s (nh, tq, hs) f32,
                    o_s (tq, C) f32 (lane-dense head assembly for c_proj)
    """
    t = pl.program_id(1)
    qi = qi_ref[t]
    ki = ki_ref[t]

    tq = acc_s.shape[1]
    hs = acc_s.shape[2]
    tk = k_ref.shape[2]

    @pl.when(ki == 0)                # first kv tile of a new q tile
    def _init():
        m_s[...] = jnp.full_like(m_s, NEG_INF)
        l_s[...] = jnp.zeros_like(l_s)
        acc_s[...] = jnp.zeros_like(acc_s)

    q = q_ref[0]                     # (nh, tq, hs) bf16, scale folded in
    k = k_ref[0]                     # (nh, tk, hs) bf16
    v = v_ref[0]                     # (nh, tk, hs) bf16

    def online_softmax_update(s):    # s: (nh, tq, tk) f32
        m_prev = m_s[...]
        m_new = jnp.maximum(m_prev, jnp.max(s, axis=-1, keepdims=True))
        alpha = jnp.exp(m_prev - m_new)
        p = jnp.exp(s - m_new)
        l_s[...] = alpha * l_s[...] + jnp.sum(p, axis=-1, keepdims=True)
        acc_s[...] = alpha * acc_s[...] + jnp.einsum(
            "hqk,hkd->hqd", p.astype(jnp.bfloat16), v,
            preferred_element_type=jnp.float32)
        m_s[...] = m_new

    @pl.when(ki < qi)                # strictly below diagonal: no mask work
    def _below_diag():
        s = jnp.einsum("hqd,hkd->hqk", q, k, preferred_element_type=jnp.float32)
        online_softmax_update(s)

    @pl.when(ki == qi)               # diagonal tile: mask + update + finalize
    def _diag():
        s = jnp.einsum("hqd,hkd->hqk", q, k, preferred_element_type=jnp.float32)
        rows = lax.broadcasted_iota(jnp.int32, (tq, tk), 0)
        cols = lax.broadcasted_iota(jnp.int32, (tq, tk), 1)
        s = jnp.where((rows >= cols)[None, :, :], s, NEG_INF)
        online_softmax_update(s)

        # finalize: normalize, assemble lane-dense (tq, C), single c_proj matmul
        o = acc_s[...] * pl.reciprocal(l_s[...], approx=True)      # (nh, tq, hs)
        for h in range(n_head):       # static lane scatter, once per q tile
            o_s[:, h * hs:(h + 1) * hs] = o[h]
        y = jnp.dot(o_s[...].astype(jnp.bfloat16), wp_ref[...],
                    preferred_element_type=jnp.float32)
        out_ref[0] = (y + bp_ref[...]).astype(out_ref.dtype)


# ------------------------------------ wrapper ------------------------------------
def attention_forward(x, w_attn, b_attn, w_proj, b_proj, n_head, *, tile_t=128):
    """Forward pass of `Attention` (prev_hiddens=None, dropout=0, eval mode).

    x        : (B, T, C) activations
    w_attn   : (C, 3C)  fused qkv weight, (in, out) layout;   b_attn: (3C,)
    w_proj   : (C, C)   output projection, (in, out) layout;  b_proj: (C,)
    returns  : y (B, T, C), (cur_k, cur_v) each (B, 1, T, hs)
    """
    B, T, C = x.shape
    assert C % n_head == 0
    hs = C // n_head
    tile_t = min(tile_t, T)
    assert T % tile_t == 0, "T must be a multiple of the q/kv tile size"
    nt = T // tile_t
    scale = float(hs) ** -0.5

    # one-time wrapper-side dtype/layout plumbing
    w_attn_bf = w_attn.astype(jnp.bfloat16)
    b_attn_f = b_attn.reshape(1, 3 * C).astype(jnp.float32)
    w_proj_bf = w_proj.astype(jnp.bfloat16)
    b_proj_f = b_proj.reshape(1, C).astype(jnp.float32)

    # constant weights: whole array in VMEM, no per-step double-buffering
    vmem = pl.BlockSpec(memory_space=pltpu.MemorySpace.VMEM)

    # ---------------- pass 1: fused QKV projection (+ last-head cache) ----------------
    q_hm, k_hm, v_hm, kv_cache = pl.pallas_call(
        functools.partial(qkv_proj_kernel, scale, n_head),
        out_shape=(
            jax.ShapeDtypeStruct((B, n_head, T, hs), jnp.bfloat16),   # scaled Q
            jax.ShapeDtypeStruct((B, n_head, T, hs), jnp.bfloat16),   # K
            jax.ShapeDtypeStruct((B, n_head, T, hs), jnp.bfloat16),   # V
            jax.ShapeDtypeStruct((B, T, 2 * hs), x.dtype),            # last-head K|V
        ),
        grid_spec=pltpu.PrefetchScalarGridSpec(
            num_scalar_prefetch=0,
            grid=(B, nt),
            in_specs=[pl.BlockSpec((1, tile_t, C), lambda b, i: (b, i, 0)),
                      vmem, vmem],
            out_specs=[
                pl.BlockSpec((1, n_head, tile_t, hs), lambda b, i: (b, 0, i, 0)),
                pl.BlockSpec((1, n_head, tile_t, hs), lambda b, i: (b, 0, i, 0)),
                pl.BlockSpec((1, n_head, tile_t, hs), lambda b, i: (b, 0, i, 0)),
                pl.BlockSpec((1, tile_t, 2 * hs), lambda b, i: (b, i, 0)),
            ],
        ),
        compiler_params=pltpu.CompilerParams(
            dimension_semantics=("parallel", "parallel")),
    )(x, w_attn_bf, b_attn_f)

    # -------- pass 2: flash attention over the flattened causal lower triangle --------
    qi_idx, ki_idx = [], []
    for q_i in range(nt):
        for k_i in range(q_i + 1):
            qi_idx.append(q_i)
            ki_idx.append(k_i)
    n_steps = nt * (nt + 1) // 2
    qi_idx = jnp.asarray(qi_idx, dtype=jnp.int32)
    ki_idx = jnp.asarray(ki_idx, dtype=jnp.int32)

    y = pl.pallas_call(
        functools.partial(attn_kernel, n_head),
        out_shape=jax.ShapeDtypeStruct((B, T, C), x.dtype),
        grid_spec=pltpu.PrefetchScalarGridSpec(
            num_scalar_prefetch=2,            # qi_idx, ki_idx live in SMEM
            grid=(B, n_steps),
            in_specs=[
                pl.BlockSpec((1, n_head, tile_t, hs),
                             lambda b, t, qi, ki: (b, 0, qi[t], 0)),   # Q tile
                pl.BlockSpec((1, n_head, tile_t, hs),
                             lambda b, t, qi, ki: (b, 0, ki[t], 0)),   # K tile
                pl.BlockSpec((1, n_head, tile_t, hs),
                             lambda b, t, qi, ki: (b, 0, ki[t], 0)),   # V tile
                vmem, vmem,                                            # wp, bp
            ],
            out_specs=pl.BlockSpec((1, tile_t, C),
                                   lambda b, t, qi, ki: (b, qi[t], 0)),
            scratch_shapes=[
                pltpu.VMEM((n_head, tile_t, 1), jnp.float32),   # running max
                pltpu.VMEM((n_head, tile_t, 1), jnp.float32),   # running denom
                pltpu.VMEM((n_head, tile_t, hs), jnp.float32),  # output accumulator
                pltpu.VMEM((tile_t, C), jnp.float32),           # lane-dense head slab
            ],
        ),
        compiler_params=pltpu.CompilerParams(
            dimension_semantics=("parallel", "arbitrary")),
    )(qi_idx, ki_idx, q_hm, k_hm, v_hm, w_proj_bf, b_proj_f)

    cur_k = kv_cache[:, None, :, :hs]    # (B, 1, T, hs) wrapper-side view split
    cur_v = kv_cache[:, None, :, hs:]
    # TODO(synk): the prev_hiddens branch (splicing cached K/V heads from a previous
    # pass) is not implemented; this is the prev_hiddens=None path. Dropout is 0 (eval).
    return y, (cur_k, cur_v)


# ----------------------- pure-JAX f32 reference for sanity check -----------------------
def ref_attention(x, w_attn, b_attn, w_proj, b_proj, n_head):
    B, T, C = x.shape
    hs = C // n_head
    qkv = x @ w_attn + b_attn
    q, k, v = jnp.split(qkv, 3, axis=-1)

    def heads(t):
        return t.reshape(B, T, n_head, hs).transpose(0, 2, 1, 3)

    qh, kh, vh = heads(q), heads(k), heads(v)
    cur_k, cur_v = kh[:, -1:], vh[:, -1:]
    s = jnp.einsum("bhqd,bhkd->bhqk", qh, kh) / jnp.sqrt(jnp.float32(hs))
    mask = jnp.tril(jnp.ones((T, T), dtype=bool))
    s = jnp.where(mask, s, -jnp.inf)
    p = jax.nn.softmax(s, axis=-1)
    y = jnp.einsum("bhqk,bhkd->bhqd", p, vh).transpose(0, 2, 1, 3).reshape(B, T, C)
    y = y @ w_proj + b_proj
    return y, (cur_k, cur_v)


def _run_case(B, T, C, n_head, seed, tol):
    key = jax.random.fold_in(jax.random.PRNGKey(0), seed)
    ks = jax.random.split(key, 5)
    init = lambda k, shp: (0.02 * jax.random.normal(k, shp)).astype(jnp.float32)
    w_attn = init(ks[0], (C, 3 * C))
    b_attn = init(ks[1], (3 * C,))
    w_proj = init(ks[2], (C, C))
    b_proj = init(ks[3], (C,))
    x = jax.random.normal(ks[4], (B, T, C), dtype=jnp.float32)

    y, (cur_k, cur_v) = attention_forward(x, w_attn, b_attn, w_proj, b_proj, n_head)
    jax.block_until_ready(y)
    jax.block_until_ready(cur_k)
    jax.block_until_ready(cur_v)

    ry, (rk, rv) = ref_attention(x, w_attn, b_attn, w_proj, b_proj, n_head)
    assert y.shape == ry.shape and cur_k.shape == rk.shape and cur_v.shape == rv.shape
    assert jnp.allclose(y, ry, atol=tol, rtol=tol), float(jnp.max(jnp.abs(y - ry)))
    assert jnp.allclose(cur_k, rk, atol=tol, rtol=tol), float(jnp.max(jnp.abs(cur_k - rk)))
    assert jnp.allclose(cur_v, rv, atol=tol, rtol=tol), float(jnp.max(jnp.abs(cur_v - rv)))


if __name__ == "__main__":
    # config matching the module: n_embd=32, n_head=4, bias=True, dropout=0 (eval)
    _run_case(B=2, T=8, C=32, n_head=4, seed=0, tol=5e-3)
    # larger case exercising the flattened causal triangle (T > tile_t, multi-tile)
    _run_case(B=1, T=384, C=128, n_head=2, seed=1, tol=1e-2)
    print("KERNEL_OK")
</pallas_src>

<mosaic_0001>
module attributes {stable_mosaic.version = 11 : i64} {
  func.func @qkv_proj_kernel(%arg0: i32, %arg1: i32, %arg2: memref<1x8x32xf32, #tpu.memory_space<vmem>>, %arg3: memref<32x96xbf16, #tpu.memory_space<vmem>>, %arg4: memref<1x96xf32, #tpu.memory_space<vmem>>, %arg5: memref<1x4x8x8xbf16, #tpu.memory_space<vmem>>, %arg6: memref<1x4x8x8xbf16, #tpu.memory_space<vmem>>, %arg7: memref<1x4x8x8xbf16, #tpu.memory_space<vmem>>, %arg8: memref<1x8x16xf32, #tpu.memory_space<vmem>>) attributes {dimension_semantics = [#tpu.dimension_semantics<parallel>, #tpu.dimension_semantics<parallel>], iteration_bounds = array<i64: 2, 1>, scalar_prefetch = 0 : i64, scratch_operands = 0 : i64, tpu.core_type = #tpu.core_type<tc>, window_params = [{transform_indices = @transform_0, window_bounds = array<i64: 1, 8, 32>}, {pipeline_mode = #tpu.pipeline_mode<synchronous>, transform_indices = @transform_1, window_bounds = array<i64: 32, 96>}, {pipeline_mode = #tpu.pipeline_mode<synchronous>, transform_indices = @transform_2, window_bounds = array<i64: 1, 96>}, {transform_indices = @transform_3, window_bounds = array<i64: 1, 4, 8, 8>}, {transform_indices = @transform_4, window_bounds = array<i64: 1, 4, 8, 8>}, {transform_indices = @transform_5, window_bounds = array<i64: 1, 4, 8, 8>}, {transform_indices = @transform_6, window_bounds = array<i64: 1, 8, 16>}]} {
    %c0 = arith.constant 0 : index
    %c0_0 = arith.constant 0 : index
    %c0_1 = arith.constant 0 : index
    %0 = vector.load %arg2[%c0, %c0_0, %c0_1] : memref<1x8x32xf32, #tpu.memory_space<vmem>>, vector<1x8x32xf32>
    %1 = vector.shape_cast %0 : vector<1x8x32xf32> to vector<8x32xf32>
    %2 = arith.truncf %1 : vector<8x32xf32> to vector<8x32xbf16>
    %c0_2 = arith.constant 0 : index
    %c0_3 = arith.constant 0 : index
    %3 = vector.load %arg3[%c0_2, %c0_3] : memref<32x96xbf16, #tpu.memory_space<vmem>>, vector<32x96xbf16>
    %cst = arith.constant dense<0.000000e+00> : vector<8x96xf32>
    %4 = tpu.matmul %2, %3, %cst {dimension_numbers = #tpu.dot_dimension_numbers<[1], [0], [0], [1], [0, 0, 1, 1], [], []>} : vector<8x32xbf16>, vector<32x96xbf16>, vector<8x96xf32> -> vector<8x96xf32>
    %c0_4 = arith.constant 0 : index
    %c0_5 = arith.constant 0 : index
    %5 = vector.load %arg4[%c0_4, %c0_5] : memref<1x96xf32, #tpu.memory_space<vmem>>, vector<1x96xf32>
    %6 = vector.broadcast %5 : vector<1x96xf32> to vector<8x96xf32>
    %7 = arith.addf %4, %6 : vector<8x96xf32>
    %8 = vector.extract_strided_slice %7 {offsets = [0, 0], sizes = [8, 8], strides = [1, 1]} : vector<8x96xf32> to vector<8x8xf32>
    %cst_6 = arith.constant 0.353553385 : f32
    %9 = vector.broadcast %cst_6 : f32 to vector<8x8xf32>
    %10 = arith.mulf %8, %9 : vector<8x8xf32>
    %11 = arith.truncf %10 : vector<8x8xf32> to vector<8x8xbf16>
    %c0_7 = arith.constant 0 : index
    %c0_8 = arith.constant 0 : index
    %c0_9 = arith.constant 0 : index
    %c0_10 = arith.constant 0 : index
    %12 = vector.load %arg5[%c0_7, %c0_8, %c0_9, %c0_10] : memref<1x4x8x8xbf16, #tpu.memory_space<vmem>>, vector<1x1x8x8xbf16>
    %13 = vector.shape_cast %12 : vector<1x1x8x8xbf16> to vector<8x8xbf16>
    %14 = vector.shape_cast %11 : vector<8x8xbf16> to vector<1x1x8x8xbf16>
    tpu.vector_store %arg5[%c0_7, %c0_8, %c0_9, %c0_10], %14 {strides = array<i32>} : memref<1x4x8x8xbf16, #tpu.memory_space<vmem>>, vector<1x1x8x8xbf16>,
    %15 = vector.extract_strided_slice %7 {offsets = [0, 32], sizes = [8, 8], strides = [1, 1]} : vector<8x96xf32> to vector<8x8xf32>
    %16 = arith.truncf %15 : vector<8x8xf32> to vector<8x8xbf16>
    %c0_11 = arith.constant 0 : index
    %c0_12 = arith.constant 0 : index
    %c0_13 = arith.constant 0 : index
    %c0_14 = arith.constant 0 : index
    %17 = vector.load %arg6[%c0_11, %c0_12, %c0_13, %c0_14] : memref<1x4x8x8xbf16, #tpu.memory_space<vmem>>, vector<1x1x8x8xbf16>
    %18 = vector.shape_cast %17 : vector<1x1x8x8xbf16> to vector<8x8xbf16>
    %19 = vector.shape_cast %16 : vector<8x8xbf16> to vector<1x1x8x8xbf16>
    tpu.vector_store %arg6[%c0_11, %c0_12, %c0_13, %c0_14], %19 {strides = array<i32>} : memref<1x4x8x8xbf16, #tpu.memory_space<vmem>>, vector<1x1x8x8xbf16>,
    %20 = vector.extract_strided_slice %7 {offsets = [0, 64], sizes = [8, 8], strides = [1, 1]} : vector<8x96xf32> to vector<8x8xf32>
    %21 = arith.truncf %20 : vector<8x8xf32> to vector<8x8xbf16>
    %c0_15 = arith.constant 0 : index
    %c0_16 = arith.constant 0 : index
    %c0_17 = arith.constant 0 : index
    %c0_18 = arith.constant 0 : index
    %22 = vector.load %arg7[%c0_15, %c0_16, %c0_17, %c0_18] : memref<1x4x8x8xbf16, #tpu.memory_space<vmem>>, vector<1x1x8x8xbf16>
    %23 = vector.shape_cast %22 : vector<1x1x8x8xbf16> to vector<8x8xbf16>
    %24 = vector.shape_cast %21 : vector<8x8xbf16> to vector<1x1x8x8xbf16>
    tpu.vector_store %arg7[%c0_15, %c0_16, %c0_17, %c0_18], %24 {strides = array<i32>} : memref<1x4x8x8xbf16, #tpu.memory_space<vmem>>, vector<1x1x8x8xbf16>,
    %25 = vector.extract_strided_slice %7 {offsets = [0, 8], sizes = [8, 8], strides = [1, 1]} : vector<8x96xf32> to vector<8x8xf32>
    %cst_19 = arith.constant 0.353553385 : f32
    %26 = vector.broadcast %cst_19 : f32 to vector<8x8xf32>
    %27 = arith.mulf %25, %26 : vector<8x8xf32>
    %28 = arith.truncf %27 : vector<8x8xf32> to vector<8x8xbf16>
    %c0_20 = arith.constant 0 : index
    %c1 = arith.constant 1 : index
    %c0_21 = arith.constant 0 : index
    %c0_22 = arith.constant 0 : index
    %29 = vector.load %arg5[%c0_20, %c1, %c0_21, %c0_22] : memref<1x4x8x8xbf16, #tpu.memory_space<vmem>>, vector<1x1x8x8xbf16>
    %30 = vector.shape_cast %29 : vector<1x1x8x8xbf16> to vector<8x8xbf16>
    %31 = vector.shape_cast %28 : vector<8x8xbf16> to vector<1x1x8x8xbf16>
    tpu.vector_store %arg5[%c0_20, %c1, %c0_21, %c0_22], %31 {strides = array<i32>} : memref<1x4x8x8xbf16, #tpu.memory_space<vmem>>, vector<1x1x8x8xbf16>,
    %32 = vector.extract_strided_slice %7 {offsets = [0, 40], sizes = [8, 8], strides = [1, 1]} : vector<8x96xf32> to vector<8x8xf32>
    %33 = arith.truncf %32 : vector<8x8xf32> to vector<8x8xbf16>
    %c0_23 = arith.constant 0 : index
    %c1_24 = arith.constant 1 : index
    %c0_25 = arith.constant 0 : index
    %c0_26 = arith.constant 0 : index
    %34 = vector.load %arg6[%c0_23, %c1_24, %c0_25, %c0_26] : memref<1x4x8x8xbf16, #tpu.memory_space<vmem>>, vector<1x1x8x8xbf16>
    %35 = vector.shape_cast %34 : vector<1x1x8x8xbf16> to vector<8x8xbf16>
    %36 = vector.shape_cast %33 : vector<8x8xbf16> to vector<1x1x8x8xbf16>
    tpu.vector_store %arg6[%c0_23, %c1_24, %c0_25, %c0_26], %36 {strides = array<i32>} : memref<1x4x8x8xbf16, #tpu.memory_space<vmem>>, vector<1x1x8x8xbf16>,
    %37 = vector.extract_strided_slice %7 {offsets = [0, 72], sizes = [8, 8], strides = [1, 1]} : vector<8x96xf32> to vector<8x8xf32>
    %38 = arith.truncf %37 : vector<8x8xf32> to vector<8x8xbf16>
    %c0_27 = arith.constant 0 : index
    %c1_28 = arith.constant 1 : index
    %c0_29 = arith.constant 0 : index
    %c0_30 = arith.constant 0 : index
    %39 = vector.load %arg7[%c0_27, %c1_28, %c0_29, %c0_30] : memref<1x4x8x8xbf16, #tpu.memory_space<vmem>>, vector<1x1x8x8xbf16>
    %40 = vector.shape_cast %39 : vector<1x1x8x8xbf16> to vector<8x8xbf16>
    %41 = vector.shape_cast %38 : vector<8x8xbf16> to vector<1x1x8x8xbf16>
    tpu.vector_store %arg7[%c0_27, %c1_28, %c0_29, %c0_30], %41 {strides = array<i32>} : memref<1x4x8x8xbf16, #tpu.memory_space<vmem>>, vector<1x1x8x8xbf16>,
    %42 = vector.extract_strided_slice %7 {offsets = [0, 16], sizes = [8, 8], strides = [1, 1]} : vector<8x96xf32> to vector<8x8xf32>
    %cst_31 = arith.constant 0.353553385 : f32
    %43 = vector.broadcast %cst_31 : f32 to vector<8x8xf32>
    %44 = arith.mulf %42, %43 : vector<8x8xf32>
    %45 = arith.truncf %44 : vector<8x8xf32> to vector<8x8xbf16>
    %c0_32 = arith.constant 0 : index
    %c2 = arith.constant 2 : index
    %c0_33 = arith.constant 0 : index
    %c0_34 = arith.constant 0 : index
    %46 = vector.load %arg5[%c0_32, %c2, %c0_33, %c0_34] : memref<1x4x8x8xbf16, #tpu.memory_space<vmem>>, vector<1x1x8x8xbf16>
    %47 = vector.shape_cast %46 : vector<1x1x8x8xbf16> to vector<8x8xbf16>
    %48 = vector.shape_cast %45 : vector<8x8xbf16> to vector<1x1x8x8xbf16>
    tpu.vector_store %arg5[%c0_32, %c2, %c0_33, %c0_34], %48 {strides = array<i32>} : memref<1x4x8x8xbf16, #tpu.memory_space<vmem>>, vector<1x1x8x8xbf16>,
    %49 = vector.extract_strided_slice %7 {offsets = [0, 48], sizes = [8, 8], strides = [1, 1]} : vector<8x96xf32> to vector<8x8xf32>
    %50 = arith.truncf %49 : vector<8x8xf32> to vector<8x8xbf16>
    %c0_35 = arith.constant 0 : index
    %c2_36 = arith.constant 2 : index
    %c0_37 = arith.constant 0 : index
    %c0_38 = arith.constant 0 : index
    %51 = vector.load %arg6[%c0_35, %c2_36, %c0_37, %c0_38] : memref<1x4x8x8xbf16, #tpu.memory_space<vmem>>, vector<1x1x8x8xbf16>
    %52 = vector.shape_cast %51 : vector<1x1x8x8xbf16> to vector<8x8xbf16>
    %53 = vector.shape_cast %50 : vector<8x8xbf16> to vector<1x1x8x8xbf16>
    tpu.vector_store %arg6[%c0_35, %c2_36, %c0_37, %c0_38], %53 {strides = array<i32>} : memref<1x4x8x8xbf16, #tpu.memory_space<vmem>>, vector<1x1x8x8xbf16>,
    %54 = vector.extract_strided_slice %7 {offsets = [0, 80], sizes = [8, 8], strides = [1, 1]} : vector<8x96xf32> to vector<8x8xf32>
    %55 = arith.truncf %54 : vector<8x8xf32> to vector<8x8xbf16>
    %c0_39 = arith.constant 0 : index
    %c2_40 = arith.constant 2 : index
    %c0_41 = arith.constant 0 : index
    %c0_42 = arith.constant 0 : index
    %56 = vector.load %arg7[%c0_39, %c2_40, %c0_41, %c0_42] : memref<1x4x8x8xbf16, #tpu.memory_space<vmem>>, vector<1x1x8x8xbf16>
    %57 = vector.shape_cast %56 : vector<1x1x8x8xbf16> to vector<8x8xbf16>
    %58 = vector.shape_cast %55 : vector<8x8xbf16> to vector<1x1x8x8xbf16>
    tpu.vector_store %arg7[%c0_39, %c2_40, %c0_41, %c0_42], %58 {strides = array<i32>} : memref<1x4x8x8xbf16, #tpu.memory_space<vmem>>, vector<1x1x8x8xbf16>,
    %59 = vector.extract_strided_slice %7 {offsets = [0, 24], sizes = [8, 8], strides = [1, 1]} : vector<8x96xf32> to vector<8x8xf32>
    %cst_43 = arith.constant 0.353553385 : f32
    %60 = vector.broadcast %cst_43 : f32 to vector<8x8xf32>
    %61 = arith.mulf %59, %60 : vector<8x8xf32>
    %62 = arith.truncf %61 : vector<8x8xf32> to vector<8x8xbf16>
    %c0_44 = arith.constant 0 : index
    %c3 = arith.constant 3 : index
    %c0_45 = arith.constant 0 : index
    %c0_46 = arith.constant 0 : index
    %63 = vector.load %arg5[%c0_44, %c3, %c0_45, %c0_46] : memref<1x4x8x8xbf16, #tpu.memory_space<vmem>>, vector<1x1x8x8xbf16>
    %64 = vector.shape_cast %63 : vector<1x1x8x8xbf16> to vector<8x8xbf16>
    %65 = vector.shape_cast %62 : vector<8x8xbf16> to vector<1x1x8x8xbf16>
    tpu.vector_store %arg5[%c0_44, %c3, %c0_45, %c0_46], %65 {strides = array<i32>} : memref<1x4x8x8xbf16, #tpu.memory_space<vmem>>, vector<1x1x8x8xbf16>,
    %66 = vector.extract_strided_slice %7 {offsets = [0, 56], sizes = [8, 8], strides = [1, 1]} : vector<8x96xf32> to vector<8x8xf32>
    %67 = arith.truncf %66 : vector<8x8xf32> to vector<8x8xbf16>
    %c0_47 = arith.constant 0 : index
    %c3_48 = arith.constant 3 : index
    %c0_49 = arith.constant 0 : index
    %c0_50 = arith.constant 0 : index
    %68 = vector.load %arg6[%c0_47, %c3_48, %c0_49, %c0_50] : memref<1x4x8x8xbf16, #tpu.memory_space<vmem>>, vector<1x1x8x8xbf16>
    %69 = vector.shape_cast %68 : vector<1x1x8x8xbf16> to vector<8x8xbf16>
    %70 = vector.shape_cast %67 : vector<8x8xbf16> to vector<1x1x8x8xbf16>
    tpu.vector_store %arg6[%c0_47, %c3_48, %c0_49, %c0_50], %70 {strides = array<i32>} : memref<1x4x8x8xbf16, #tpu.memory_space<vmem>>, vector<1x1x8x8xbf16>,
    %71 = vector.extract_strided_slice %7 {offsets = [0, 88], sizes = [8, 8], strides = [1, 1]} : vector<8x96xf32> to vector<8x8xf32>
    %72 = arith.truncf %71 : vector<8x8xf32> to vector<8x8xbf16>
    %c0_51 = arith.constant 0 : index
    %c3_52 = arith.constant 3 : index
    %c0_53 = arith.constant 0 : index
    %c0_54 = arith.constant 0 : index
    %73 = vector.load %arg7[%c0_51, %c3_52, %c0_53, %c0_54] : memref<1x4x8x8xbf16, #tpu.memory_space<vmem>>, vector<1x1x8x8xbf16>
    %74 = vector.shape_cast %73 : vector<1x1x8x8xbf16> to vector<8x8xbf16>
    %75 = vector.shape_cast %72 : vector<8x8xbf16> to vector<1x1x8x8xbf16>
    tpu.vector_store %arg7[%c0_51, %c3_52, %c0_53, %c0_54], %75 {strides = array<i32>} : memref<1x4x8x8xbf16, #tpu.memory_space<vmem>>, vector<1x1x8x8xbf16>,
    %76 = vector.extract_strided_slice %7 {offsets = [0, 56], sizes = [8, 8], strides = [1, 1]} : vector<8x96xf32> to vector<8x8xf32>
    %c0_55 = arith.constant 0 : index
    %c0_56 = arith.constant 0 : index
    %c0_57 = arith.constant 0 : index
    %77 = vector.load %arg8[%c0_55, %c0_56, %c0_57] : memref<1x8x16xf32, #tpu.memory_space<vmem>>, vector<1x8x8xf32>
    %78 = vector.shape_cast %77 : vector<1x8x8xf32> to vector<8x8xf32>
    %79 = vector.shape_cast %76 : vector<8x8xf32> to vector<1x8x8xf32>
    tpu.vector_store %arg8[%c0_55, %c0_56, %c0_57], %79 {strides = array<i32>} : memref<1x8x16xf32, #tpu.memory_space<vmem>>, vector<1x8x8xf32>,
    %80 = vector.extract_strided_slice %7 {offsets = [0, 88], sizes = [8, 8], strides = [1, 1]} : vector<8x96xf32> to vector<8x8xf32>
    %c0_58 = arith.constant 0 : index
    %c0_59 = arith.constant 0 : index
    %c8 = arith.constant 8 : index
    %81 = vector.load %arg8[%c0_58, %c0_59, %c8] : memref<1x8x16xf32, #tpu.memory_space<vmem>>, vector<1x8x8xf32>
    %82 = vector.shape_cast %81 : vector<1x8x8xf32> to vector<8x8xf32>
    %83 = vector.shape_cast %80 : vector<8x8xf32> to vector<1x8x8xf32>
    tpu.vector_store %arg8[%c0_58, %c0_59, %c8], %83 {strides = array<i32>} : memref<1x8x16xf32, #tpu.memory_space<vmem>>, vector<1x8x8xf32>,
    return
  }
  func.func @transform_0(%arg0: i32, %arg1: i32) -> (i32, i32, i32) {
    %c0_i32 = arith.constant 0 : i32
    %c0_i32_0 = arith.constant 0 : i32
    return %arg0, %arg1, %c0_i32 : i32, i32, i32
  }
  func.func @transform_1(%arg0: i32, %arg1: i32) -> (i32, i32) {
    %c0_i32 = arith.constant 0 : i32
    %c0_i32_0 = arith.constant 0 : i32
    %c0_i32_1 = arith.constant 0 : i32
    return %c0_i32, %c0_i32_0 : i32, i32
  }
  func.func @transform_2(%arg0: i32, %arg1: i32) -> (i32, i32) {
    %c0_i32 = arith.constant 0 : i32
    %c0_i32_0 = arith.constant 0 : i32
    %c0_i32_1 = arith.constant 0 : i32
    return %c0_i32, %c0_i32_0 : i32, i32
  }
  func.func @transform_3(%arg0: i32, %arg1: i32) -> (i32, i32, i32, i32) {
    %c0_i32 = arith.constant 0 : i32
    %c0_i32_0 = arith.constant 0 : i32
    %c0_i32_1 = arith.constant 0 : i32
    return %arg0, %c0_i32, %arg1, %c0_i32_0 : i32, i32, i32, i32
  }
  func.func @transform_4(%arg0: i32, %arg1: i32) -> (i32, i32, i32, i32) {
    %c0_i32 = arith.constant 0 : i32
    %c0_i32_0 = arith.constant 0 : i32
    %c0_i32_1 = arith.constant 0 : i32
    return %arg0, %c0_i32, %arg1, %c0_i32_0 : i32, i32, i32, i32
  }
  func.func @transform_5(%arg0: i32, %arg1: i32) -> (i32, i32, i32, i32) {
    %c0_i32 = arith.constant 0 : i32
    %c0_i32_0 = arith.constant 0 : i32
    %c0_i32_1 = arith.constant 0 : i32
    return %arg0, %c0_i32, %arg1, %c0_i32_0 : i32, i32, i32, i32
  }
  func.func @transform_6(%arg0: i32, %arg1: i32) -> (i32, i32, i32) {
    %c0_i32 = arith.constant 0 : i32
    %c0_i32_0 = arith.constant 0 : i32
    return %arg0, %arg1, %c0_i32 : i32, i32, i32
  }
}

</mosaic_0001>

<llo_original>
// kernel: tpu_custom_call.1
$region0: #{tpu_custom_call.1}
  #allocation0 [shape = 'u32[]', space=smem, size = 0x4, offset = 0x4, fixed_abs, tag = 'smem constant byte address 0x4 - core index']
  #allocation1 [shape = 'u32[144,128]{1,0:T(1,128)}', space=vmem, size = 0x12000, scoped, tag = 'internal scratch']
  %s0 = inlined_call_operand.hbm [shape: f32[2,8,32], index: 0, kind: input, shape index: {}]
  %s1 = inlined_call_operand.hbm [shape: bf16[32,96], index: 1, kind: input, shape index: {}]
  %s2 = inlined_call_operand.vmem [shape: f32[1,96], index: 2, kind: input, shape index: {}]
  %s3 = inlined_call_operand.hbm [shape: bf16[2,4,8,8], index: 3, kind: output, shape index: {0}]
  %s4 = inlined_call_operand.hbm [shape: bf16[2,4,8,8], index: 4, kind: output, shape index: {1}]
  %s5 = inlined_call_operand.hbm [shape: bf16[2,4,8,8], index: 5, kind: output, shape index: {2}]
  %s6 = inlined_call_operand.hbm [shape: f32[2,8,16], index: 6, kind: output, shape index: {3}]
  %7 = xla_tuple %s3, %s4, %s5, %s6
  %s8 = sld [smem:[#allocation0]]
  $region77: #{tpu_custom_call.1} parent=0
    _
  %s10 = ssub.s32 1, %s8
  %s11 = scalar_select 0, %s10, %s8
  $region1: #{tpu_custom_call.1} parent=0
    #allocation2 [shape = 'u8[8192]{0}', space=vmem, size = 0x2000, scoped, tag = 'input window, operand 0']
    #allocation3 [shape = 's32[2]{0}', space=sflag, size = 0x8, scoped, tag = 'scoped memory for tpu_custom_call.1']
    #allocation4 [shape = 's32[2]{0}', space=sflag, size = 0x8, scoped, tag = 'scoped memory for tpu_custom_call.1']
    #allocation5 [shape = 'u8[8192]{0}', space=vmem, size = 0x2000, scoped, tag = 'input window, operand 1, single buffered']
    #allocation6 [shape = 's32[1]{0}', space=sflag, size = 0x4, scoped, tag = 'scoped memory for tpu_custom_call.1']
    #allocation7 [shape = 'u8[16384]{0}', space=vmem, size = 0x4000, scoped, tag = 'output window, operand 0']
    #allocation8 [shape = 'u8[16384]{0}', space=vmem, size = 0x4000, scoped, tag = 'output window, operand 1']
    #allocation9 [shape = 's32[2]{0}', space=sflag, size = 0x8, scoped, tag = 'scoped memory for tpu_custom_call.1']
    #allocation10 [shape = 'u8[16384]{0}', space=vmem, size = 0x4000, scoped, tag = 'output window, operand 2']
    #allocation11 [shape = 'u8[8192]{0}', space=vmem, size = 0x2000, scoped, tag = 'output window, operand 3']
    #allocation12 [shape = 's32[2]{0}', space=sflag, size = 0x8, scoped, tag = 'scoped memory for tpu_custom_call.1']
    %12 = vsyncpa [#allocation3], 0
    %s13 = scalar_lea.sflag [#allocation3], 1
    %14 = vsyncpa %s13, 0
    %15 = vsyncpa [#allocation6], 0
    %16 = vsyncpa [#allocation4], 0
    %s17 = scalar_lea.sflag [#allocation4], 1
    %18 = vsyncpa %s17, 0
    %19 = vsyncpa [#allocation9], 0
    %s20 = scalar_lea.sflag [#allocation9], 1
    %21 = vsyncpa %s20, 0
    %22 = vsyncpa [#allocation12], 0
    %s23 = scalar_lea.sflag [#allocation12], 1
    %24 = vsyncpa %s23, 0
    loop: start=0, step=1, limit=4
    $region2: #{tpu_custom_call.1} parent=1 // loop_pre_header
      _
    $region3: #{tpu_custom_call.1} parent=1 // loop_header
      %s26 = sphi 0, %s30
      %p27 = scmp.ge.s32.totalorder %s26, 4
      %s33 = sphi 0, %s45
      %s34 = sphi 0, %s41
      %s35 = sphi 0, %s33
      %s36 = sphi 0, %s34
      %s37 = sphi 0, %s35
      %s38 = sphi 0, %s36
      %s50 = sphi 0, %s52
      %s53 = sphi 0, %s50
      %s54 = sphi 0, %s53
      %s70 = sphi 0, %s54
      %s74 = sphi 0, %s74
      %s76 = sphi 0, %s74
      %s77 = sphi 0, %s76
      %s91 = sphi 0, %s77
      %s95 = sphi 0, %s95
      %s97 = sphi 0, %s95
      %s98 = sphi 0, %s97
      %s112 = sphi 0, %s98
      %s120 = sphi 0, %s122
      %s123 = sphi 0, %s120
      %s124 = sphi 0, %s123
      %s140 = sphi 0, %s124
      %s148 = sphi 0, %s150
      %s151 = sphi 0, %s148
      %s152 = sphi 0, %s151
      %s168 = sphi 0, %s152
      %s176 = sphi 0, %s178
      %s179 = sphi 0, %s176
      %s180 = sphi 0, %s179
      %s196 = sphi 0, %s180
      %s204 = sphi 0, %s206
      %s207 = sphi 0, %s204
      %s208 = sphi 0, %s207
      %s224 = sphi 0, %s208
    $region4: #{tpu_custom_call.1} parent=1 // loop_header_branch
      %29 = sbr.rel (%p27) target = $region8
    $region5: #{tpu_custom_call.1} parent=1 // loop_body
      %s31 = ssub.s32 %s26, 1
      %s32 = ssub.s32 %s26, 2
      %s39 = sadd.s32 1, %s34
      %p40 = scmp.ge.s32.totalorder %s39, 1
      %s41 = scalar_select %p40, 0, %s39
      %s42 = sadd.s32 1, %s33
      %s43 = scalar_select %p40, %s42, %s33
      %p44 = scmp.ge.s32.totalorder %s43, 2
      %s45 = scalar_select %p44, 0, %s43
      %s46 = ssub.s32 %s33, %s45
      %s47 = ssub.s32 %s34, %s41
      %s48 = sor.u32 %s46, %s47
      %p49 = scmp.eq.s32.totalorder %s48, 0
      %s51 = sadd.s32 %s50, 1
      %s52 = scalar_select %p49, %s50, %s51
      %p55 = pneg %p49
      %p56 = scmp.eq.s32.totalorder %s26, 1
      %p57 = por %p55, %p56
      %p58 = scmp.ne.s32.totalorder %s50, %s53
      %p59 = scmp.eq.s32.totalorder %s26, 0
      %p60 = por %p58, %p59
      %p61 = scmp.ne.s32.totalorder %s50, %s53
      %p62 = scmp.eq.s32.totalorder %s31, 1
      %p63 = por %p61, %p62
      %p64 = scmp.ne.s32.totalorder %s53, %s54
      %p65 = scmp.eq.s32.totalorder %s31, 0
      %p66 = por %p64, %p65
      %p67 = scmp.ne.s32.totalorder %s53, %s54
      %p68 = scmp.eq.s32.totalorder %s32, 1
      %p69 = por %p67, %p68
      %p71 = scmp.ne.s32.totalorder %s54, %s70
      %p72 = scmp.eq.s32.totalorder %s32, 0
      %p73 = por %p71, %p72
      %s75 = sadd.s32 %s74, 1
      %p78 = scmp.eq.s32.totalorder %s26, 1
      %p79 = scmp.ne.s32.totalorder %s74, %s76
      %p80 = scmp.eq.s32.totalorder %s26, 0
      %p81 = por %p79, %p80
      %p82 = scmp.ne.s32.totalorder %s74, %s76
      %p83 = scmp.eq.s32.totalorder %s31, 1
      %p84 = por %p82, %p83
      %p85 = scmp.ne.s32.totalorder %s76, %s77
      %p86 = scmp.eq.s32.totalorder %s31, 0
      %p87 = por %p85, %p86
      %p88 = scmp.ne.s32.totalorder %s76, %s77
      %p89 = scmp.eq.s32.totalorder %s32, 1
      %p90 = por %p88, %p89
      %p92 = scmp.ne.s32.totalorder %s77, %s91
      %p93 = scmp.eq.s32.totalorder %s32, 0
      %p94 = por %p92, %p93
      %s96 = sadd.s32 %s95, 1
      %p99 = scmp.eq.s32.totalorder %s26, 1
      %p100 = scmp.ne.s32.totalorder %s95, %s97
      %p101 = scmp.eq.s32.totalorder %s26, 0
      %p102 = por %p100, %p101
      %p103 = scmp.ne.s32.totalorder %s95, %s97
      %p104 = scmp.eq.s32.totalorder %s31, 1
      %p105 = por %p103, %p104
      %p106 = scmp.ne.s32.totalorder %s97, %s98
      %p107 = scmp.eq.s32.totalorder %s31, 0
      %p108 = por %p106, %p107
      %p109 = scmp.ne.s32.totalorder %s97, %s98
      %p110 = scmp.eq.s32.totalorder %s32, 1
      %p111 = por %p109, %p110
      %p113 = scmp.ne.s32.totalorder %s98, %s112
      %p114 = scmp.eq.s32.totalorder %s32, 0
      %p115 = por %p113, %p114
      %s116 = ssub.s32 %s33, %s45
      %s117 = ssub.s32 %s34, %s41
      %s118 = sor.u32 %s116, %s117
      %p119 = scmp.eq.s32.totalorder %s118, 0
      %s121 = sadd.s32 %s120, 1
      %s122 = scalar_select %p119, %s120, %s121
      %p125 = pneg %p119
      %p126 = scmp.eq.s32.totalorder %s26, 1
      %p127 = por %p125, %p126
      %p128 = scmp.ne.s32.totalorder %s120, %s123
      %p129 = scmp.eq.s32.totalorder %s26, 0
      %p130 = por %p128, %p129
      %p131 = scmp.ne.s32.totalorder %s120, %s123
      %p132 = scmp.eq.s32.totalorder %s31, 1
      %p133 = por %p131, %p132
      %p134 = scmp.ne.s32.totalorder %s123, %s124
      %p135 = scmp.eq.s32.totalorder %s31, 0
      %p136 = por %p134, %p135
      %p137 = scmp.ne.s32.totalorder %s123, %s124
      %p138 = scmp.eq.s32.totalorder %s32, 1
      %p139 = por %p137, %p138
      %p141 = scmp.ne.s32.totalorder %s124, %s140
      %p142 = scmp.eq.s32.totalorder %s32, 0
      %p143 = por %p141, %p142
      %s144 = ssub.s32 %s33, %s45
      %s145 = ssub.s32 %s34, %s41
      %s146 = sor.u32 %s144, %s145
      %p147 = scmp.eq.s32.totalorder %s146, 0
      %s149 = sadd.s32 %s148, 1
      %s150 = scalar_select %p147, %s148, %s149
      %p153 = pneg %p147
      %p154 = scmp.eq.s32.totalorder %s26, 1
      %p155 = por %p153, %p154
      %p156 = scmp.ne.s32.totalorder %s148, %s151
      %p157 = scmp.eq.s32.totalorder %s26, 0
      %p158 = por %p156, %p157
      %p159 = scmp.ne.s32.totalorder %s148, %s151
      %p160 = scmp.eq.s32.totalorder %s31, 1
      %p161 = por %p159, %p160
      %p162 = scmp.ne.s32.totalorder %s151, %s152
      %p163 = scmp.eq.s32.totalorder %s31, 0
      %p164 = por %p162, %p163
      %p165 = scmp.ne.s32.totalorder %s151, %s152
      %p166 = scmp.eq.s32.totalorder %s32, 1
      %p167 = por %p165, %p166
      %p169 = scmp.ne.s32.totalorder %s152, %s168
      %p170 = scmp.eq.s32.totalorder %s32, 0
      %p171 = por %p169, %p170
      %s172 = ssub.s32 %s33, %s45
      %s173 = ssub.s32 %s34, %s41
      %s174 = sor.u32 %s172, %s173
      %p175 = scmp.eq.s32.totalorder %s174, 0
      %s177 = sadd.s32 %s176, 1
      %s178 = scalar_select %p175, %s176, %s177
      %p181 = pneg %p175
      %p182 = scmp.eq.s32.totalorder %s26, 1
      %p183 = por %p181, %p182
      %p184 = scmp.ne.s32.totalorder %s176, %s179
      %p185 = scmp.eq.s32.totalorder %s26, 0
      %p186 = por %p184, %p185
      %p187 = scmp.ne.s32.totalorder %s176, %s179
      %p188 = scmp.eq.s32.totalorder %s31, 1
      %p189 = por %p187, %p188
      %p190 = scmp.ne.s32.totalorder %s179, %s180
      %p191 = scmp.eq.s32.totalorder %s31, 0
      %p192 = por %p190, %p191
      %p193 = scmp.ne.s32.totalorder %s179, %s180
      %p194 = scmp.eq.s32.totalorder %s32, 1
      %p195 = por %p193, %p194
      %p197 = scmp.ne.s32.totalorder %s180, %s196
      %p198 = scmp.eq.s32.totalorder %s32, 0
      %p199 = por %p197, %p198
      %s200 = ssub.s32 %s33, %s45
      %s201 = ssub.s32 %s34, %s41
      %s202 = sor.u32 %s200, %s201
      %p203 = scmp.eq.s32.totalorder %s202, 0
      %s205 = sadd.s32 %s204, 1
      %s206 = scalar_select %p203, %s204, %s205
      %p209 = pneg %p203
      %p210 = scmp.eq.s32.totalorder %s26, 1
      %p211 = por %p209, %p210
      %p212 = scmp.ne.s32.totalorder %s204, %s207
      %p213 = scmp.eq.s32.totalorder %s26, 0
      %p214 = por %p212, %p213
      %p215 = scmp.ne.s32.totalorder %s204, %s207
      %p216 = scmp.eq.s32.totalorder %s31, 1
      %p217 = por %p215, %p216
      %p218 = scmp.ne.s32.totalorder %s207, %s208
      %p219 = scmp.eq.s32.totalorder %s31, 0
      %p220 = por %p218, %p219
      %p221 = scmp.ne.s32.totalorder %s207, %s208
      %p222 = scmp.eq.s32.totalorder %s32, 1
      %p223 = por %p221, %p222
      %p225 = scmp.ne.s32.totalorder %s208, %s224
      %p226 = scmp.eq.s32.totalorder %s32, 0
      %p227 = por %p225, %p226
      %p228 = scmp.le.s32.totalorder 1, %s26
      %p229 = scmp.lt.s32.totalorder %s26, 3
      %p230 = pnand %p228, %p229
      %p231 = pneg %p230
      // Predicated region
      $region9: #{tpu_custom_call.1} parent=5 // pred_check
        _
      $region10: #{tpu_custom_call.1} parent=5 // pred_check_branch
        %233 = sbr.rel (%p230) target = $region12
      $region11: #{tpu_custom_call.1} parent=5 // pred_region
        %s234 = ssub.s32 %s26, 1
        // Predicated region
        $region13: #{tpu_custom_call.1} parent=11 // pred_check
          %p235 = pneg %p87
        $region14: #{tpu_custom_call.1} parent=11 // pred_check_branch
          %237 = sbr.rel (%p235) target = $region16
        $region15: #{tpu_custom_call.1} parent=11 // pred_region
          %s239 = ssub.s32 256, 256
          %240 = vsyncadd [#allocation6], %s239
          %s241 = sshll.u32 [#allocation5], 4
          %s242 = int_to_ptr.vmem [resolvable:$true] %s241
          %247 = dma.hbm_to_vmem [thread:$0]  %s1, 256, %s242, [#allocation6], 64, 64, 4
        $region16: #{tpu_custom_call.1} parent=11 // pred_fallthru
          _
        // Predicated region
        $region17: #{tpu_custom_call.1} parent=11 // pred_check
          %p248 = pneg %p108
        $region18: #{tpu_custom_call.1} parent=11 // pred_check_branch
          %250 = sbr.rel (%p248) target = $region20
        $region19: #{tpu_custom_call.1} parent=11 // pred_region
          _
        $region20: #{tpu_custom_call.1} parent=11 // pred_fallthru
          _
      $region12: #{tpu_custom_call.1} parent=5 // pred_fallthru
        _
      %p251 = scmp.lt.s32.totalorder %s26, 2
      // Predicated region
      $region21: #{tpu_custom_call.1} parent=5 // pred_check
        %p252 = pneg %p251
      $region22: #{tpu_custom_call.1} parent=5 // pred_check_branch
        %254 = sbr.rel (%p252) target = $region24
      $region23: #{tpu_custom_call.1} parent=5 // pred_region
        // Predicated region
        $region25: #{tpu_custom_call.1} parent=23 // pred_check
          %p255 = pneg %p60
        $region26: #{tpu_custom_call.1} parent=23 // pred_check_branch
          %257 = sbr.rel (%p255) target = $region28
        $region27: #{tpu_custom_call.1} parent=23 // pred_region
          %s258 = sand.u32 %s50, 1
          %s259 = scalar_lea.sflag [#allocation3], %s258
          %s260 = sand.u32 %s50, 1
          %s261 = smul.addr %s260, 8
          %s262 = scalar_lea.vmem [#allocation2], %s261
          %s264 = ssub.s32 128, 128
          %265 = vsyncadd %s259, %s264
          %s266 = sadd.s32 %s34, %s33
          %s267 = smul.addr %s266, 128
          %s268 = scalar_lea.hbm %s0, %s267
          %s270 = sshll.u32 %s262, 4
          %s271 = int_to_ptr.vmem [resolvable:$true] %s270
          %273 = dma.hbm_to_vmem [thread:$0]  %s268, 128, %s271, %s259
        $region28: #{tpu_custom_call.1} parent=23 // pred_fallthru
          _
      $region24: #{tpu_custom_call.1} parent=5 // pred_fallthru
        _
      %p274 = scmp.le.s32.totalorder 1, %s26
      %p275 = scmp.lt.s32.totalorder %s26, 3
      %p276 = pnand %p274, %p275
      %p277 = pneg %p276
      // Predicated region
      $region29: #{tpu_custom_call.1} parent=5 // pred_check
        _
      $region30: #{tpu_custom_call.1} parent=5 // pred_check_branch
        %279 = sbr.rel (%p276) target = $region32
      $region31: #{tpu_custom_call.1} parent=5 // pred_region
        %s280 = ssub.s32 %s26, 1
        %s281 = sand.u32 %s53, 1
        %s282 = scalar_lea.sflag [#allocation3], %s281
        %s283 = sand.u32 %s53, 1
        %s284 = smul.addr %s283, 8
        %s285 = scalar_lea.vmem [#allocation2], %s284
        // Predicated region
        $region33: #{tpu_custom_call.1} parent=31 // pred_check
          %p286 = pneg %p66
        $region34: #{tpu_custom_call.1} parent=31 // pred_check_branch
          %288 = sbr.rel (%p286) target = $region36
        $region35: #{tpu_custom_call.1} parent=31 // pred_region
          %289 = dma.done %s282, 128
        $region36: #{tpu_custom_call.1} parent=31 // pred_fallthru
          _
        // Predicated region
        $region37: #{tpu_custom_call.1} parent=31 // pred_check
          %p290 = pneg %p87
        $region38: #{tpu_custom_call.1} parent=31 // pred_check_branch
          %292 = sbr.rel (%p290) target = $region40
        $region39: #{tpu_custom_call.1} parent=31 // pred_region
          %293 = dma.done [#allocation6], 256
        $region40: #{tpu_custom_call.1} parent=31 // pred_fallthru
          _
        %s294 = sand.u32 %s53, 1
        %s295 = scalar_lea.sflag [#allocation3], %s294
        %s296 = sand.u32 %s53, 1
        %s297 = smul.addr %s296, 8
        %s298 = scalar_lea.vmem [#allocation2], %s297
        %p299 = pneg %p66
        %p300 = pneg %p63
        %p301 = pneg %p87
        %p302 = pneg %p84
        %p303 = pneg %p108
        %p304 = pneg %p105
        %p305 = pneg %p136
        %p306 = pneg %p133
        %s307 = sand.u32 %s123, 1
        %s308 = scalar_lea.sflag [#allocation4], %s307
        %s309 = sand.u32 %s123, 1
        %s310 = smul.addr %s309, 16
        %s311 = scalar_lea.vmem [#allocation7], %s310
        %p312 = pneg %p164
        %p313 = pneg %p161
        %s314 = sand.u32 %s31, 1
        %s315 = scalar_lea.sflag [#allocation9], %s314
        %s316 = sand.u32 %s151, 1
        %s317 = smul.addr %s316, 16
        %s318 = scalar_lea.vmem [#allocation8], %s317
        %p319 = pneg %p192
        %p320 = pneg %p189
        %s321 = sand.u32 %s31, 1
        %s322 = scalar_lea.sflag [#allocation9], %s321
        %s323 = sand.u32 %s179, 1
        %s324 = smul.addr %s323, 16
        %s325 = scalar_lea.vmem [#allocation10], %s324
        %p326 = pneg %p220
        %p327 = pneg %p217
        %s328 = sand.u32 %s207, 1
        %s329 = scalar_lea.sflag [#allocation12], %s328
        %s330 = sand.u32 %s207, 1
        %s331 = smul.addr %s330, 8
        %s332 = scalar_lea.vmem [#allocation11], %s331
        %v334 = vld [vmem:[%s285] sm:$0xff]
        %v335 = vpack.c.bf16 %v334, %v334
        %v336 = vld [vmem:[#allocation5] sm:$0xf]
        %v337 = vld [vmem:[#allocation5 + $0x4] sm:$0xf]
        %v338 = vld [vmem:[#allocation5 + $0x8] sm:$0xf]
        %v339 = vld [vmem:[#allocation5 + $0xc] sm:$0xf]
        %v340 = vld [vmem:[%s2] sm:$0x1]
        %v342 = vlaneseq
        %v343 = vshrl.u32 %v342, 7
        %v344 = vsub.s32 0, %v343
        %v345 = vrot.slane %v340, %v344
        %v351 = vunpack.c.l.b16 %v336
        %v352 = vunpack.c.l.b16 %v337
        %v353 = vunpack.c.l.b16 %v338
        %v354 = vunpack.c.l.b16 %v339
        %v355 = vpack.c.b16 %v352, %v351
        %v356 = vpack.c.b16 %v354, %v353
        %vm359 = vcmask 261120
        %v361 = vsel %vm359, %v335, 0
        %363 = vmatprep.subr.bf16.mxu0 0
        %364 = vmatpush1.bf16.msra.mxu0 %v355
        %365 = vmatprep.subr.bf16.mxu0 0
        %366 = vmatpush1.bf16.msra.mxu0 %v356
        %367 = vmatprep.subr.bf16.mxu0 0
        %368 = vmatpush1.bf16.msra.mxu0 0
        %369 = vmatprep.subr.bf16.mxu0 0
        %370 = vmatpush1.bf16.msra.mxu0 0
        %371 = vmatprep.subr.bf16.mxu0 0
        %372 = vmatpush1.bf16.msra.mxu0 0
        %373 = vmatprep.subr.bf16.mxu0 0
        %374 = vmatpush1.bf16.msra.mxu0 0
        %375 = vmatprep.subr.bf16.mxu0 0
        %376 = vmatpush1.bf16.msra.mxu0 0
        %377 = vmatprep.subr.bf16.mxu0 0
        %378 = vmatpush1.bf16.msra.mxu0 0
        %379 = vmatprep.subr.bf16.mxu0 0
        %380 = vmatpush1.bf16.msra.mxu0 0
        %381 = vmatprep.subr.bf16.mxu0 0
        %382 = vmatpush1.bf16.msra.mxu0 0
        %383 = vmatprep.subr.bf16.mxu0 0
        %384 = vmatpush1.bf16.msra.mxu0 0
        %385 = vmatprep.subr.bf16.mxu0 0
        %386 = vmatpush1.bf16.msra.mxu0 0
        %387 = vmatprep.subr.bf16.mxu0 0
        %388 = vmatpush1.bf16.msra.mxu0 0
        %389 = vmatprep.subr.bf16.mxu0 0
        %390 = vmatpush1.bf16.msra.mxu0 0
        %391 = vmatprep.subr.bf16.mxu0 0
        %392 = vmatpush1.bf16.msra.mxu0 0
        %393 = vmatprep.subr.bf16.mxu0 0
        %394 = vmatpush1.bf16.msra.mxu0 0
        %395 = vmatprep.mubr.bf16.mxu0 0
        %396 = vmatmul.mubr.bf16.gmra.mrb[0].mxu0 %v361
        %v397 = vpop.f32.mrb[0].mxu0
        %v398 = vadd.f32 %v345, %v397
        %v399 = vpop.f32.mrb[0].mxu0
        %v400 = vpop.f32.mrb[0].mxu0
        %v401 = vpop.f32.mrb[0].mxu0
        %402 = vdwg.mxu0
        %v403 = vmul.f32 %v398, 0.35355338
        %v404 = vpack.c.bf16 %v403, %v403
        %vm405 = vcmask 60416
        %406 = vst.msk [vmem:[%s311] sm:$0xf] %vm405, %v404
        %v407 = vpack.c.bf16 %v398, %v398
        %v409 = vunpack.c.l.b16 %v407
        %v410 = vpack.c.b16 %v409, %v409
        %411 = vrot.lane.b32.xlu0 %v410, 96
        %v412 = vpop.permute.xlu0 %411
        %414 = vst.msk [vmem:[%s318] sm:$0xf] %vm405, %v412
        %415 = vrot.lane.b32.xlu0 %v410, 64
        %v416 = vpop.permute.xlu0 %415
        %418 = vst.msk [vmem:[%s325] sm:$0xf] %vm405, %v416
        %v420 = vunpack.c.l.b16 %v404
        %v421 = vpack.c.b16 %v420, %v420
        %422 = vrot.lane.b32.xlu0 %v421, 120
        %v423 = vpop.permute.xlu0 %422
        %s425 = scalar_lea.vmem %s311, 4 [#allocation7]
        %426 = vst.msk [vmem:[%s425] sm:$0xf] %vm405, %v423
        %427 = vrot.lane.b32.xlu0 %v410, 88
        %v428 = vpop.permute.xlu0 %427
        %s430 = scalar_lea.vmem %s318, 4 [#allocation8]
        %431 = vst.msk [vmem:[%s430] sm:$0xf] %vm405, %v428
        %432 = vrot.lane.b32.xlu0 %v410, 56
        %v433 = vpop.permute.xlu0 %432
        %s435 = scalar_lea.vmem %s325, 4 [#allocation10]
        %436 = vst.msk [vmem:[%s435] sm:$0xf] %vm405, %v433
        %437 = vrot.lane.b32.xlu0 %v421, 112
        %v438 = vpop.permute.xlu0 %437
        %s440 = scalar_lea.vmem %s311, 8 [#allocation7]
        %441 = vst.msk [vmem:[%s440] sm:$0xf] %vm405, %v438
        %442 = vrot.lane.b32.xlu0 %v410, 80
        %v443 = vpop.permute.xlu0 %442
        %s445 = scalar_lea.vmem %s318, 8 [#allocation8]
        %446 = vst.msk [vmem:[%s445] sm:$0xf] %vm405, %v443
        %447 = vrot.lane.b32.xlu0 %v410, 48
        %v448 = vpop.permute.xlu0 %447
        %s450 = scalar_lea.vmem %s325, 8 [#allocation10]
        %451 = vst.msk [vmem:[%s450] sm:$0xf] %vm405, %v448
        %452 = vrot.lane.b32.xlu0 %v421, 104
        %v453 = vpop.permute.xlu0 %452
        %s455 = scalar_lea.vmem %s311, 12 [#allocation7]
        %456 = vst.msk [vmem:[%s455] sm:$0xf] %vm405, %v453
        %457 = vrot.lane.b32.xlu0 %v410, 72
        %v458 = vpop.permute.xlu0 %457
        %s460 = scalar_lea.vmem %s318, 12 [#allocation8]
        %461 = vst.msk [vmem:[%s460] sm:$0xf] %vm405, %v458
        %462 = vrot.lane.b32.xlu0 %v410, 40
        %v463 = vpop.permute.xlu0 %462
        %s465 = scalar_lea.vmem %s325, 12 [#allocation10]
        %466 = vst.msk [vmem:[%s465] sm:$0xf] %vm405, %v463
        %468 = vrot.lane.b32.xlu0 %v398, 72
        %v469 = vpop.permute.xlu0 %468
        %vm471 = vcmask 64512
        %472 = vst.msk [vmem:[%s332] sm:$0xff] %vm471, %v469
        %473 = vrot.lane.b32.xlu0 %v398, 48
        %v474 = vpop.permute.xlu0 %473
        %vm476 = vcmask 130112
        %477 = vst.msk [vmem:[%s332] sm:$0xff] %vm476, %v474
        %s478 = sand.u32 %s123, 1
        %s479 = scalar_lea.sflag [#allocation4], %s478
        %s480 = sand.u32 %s123, 1
        %s481 = smul.addr %s480, 16
        %s482 = scalar_lea.vmem [#allocation7], %s481
        %s483 = sand.u32 %s31, 1
        %s484 = scalar_lea.sflag [#allocation9], %s483
        %s485 = sand.u32 %s151, 1
        %s486 = smul.addr %s485, 16
        %s487 = scalar_lea.vmem [#allocation8], %s486
        %s488 = sand.u32 %s31, 1
        %s489 = scalar_lea.sflag [#allocation9], %s488
        %s490 = sand.u32 %s179, 1
        %s491 = smul.addr %s490, 16
        %s492 = scalar_lea.vmem [#allocation10], %s491
        %s493 = sand.u32 %s207, 1
        %s494 = scalar_lea.sflag [#allocation12], %s493
        %s495 = sand.u32 %s207, 1
        %s496 = smul.addr %s495, 8
        %s497 = scalar_lea.vmem [#allocation11], %s496
        // Predicated region
        $region41: #{tpu_custom_call.1} parent=31 // pred_check
          %p498 = pneg %p133
        $region42: #{tpu_custom_call.1} parent=31 // pred_check_branch
          %500 = sbr.rel (%p498) target = $region44
        $region43: #{tpu_custom_call.1} parent=31 // pred_region
          %s502 = ssub.s32 256, 256
          %503 = vsyncadd %s479, %s502
          %s504 = smul.addr %s35, 4
          %s505 = sadd.s32 %s36, %s504
          %s506 = smul.addr %s505, 64
          %s507 = scalar_lea.hbm %s3, %s506
          %s508 = sshll.u32 %s482, 4
          %s509 = int_to_ptr.vmem [resolvable:$true] %s508
          %514 = dma.vmem_to_hbm [thread:$0]  %s509, 256, %s507, %s479, 64, 64, 4
        $region44: #{tpu_custom_call.1} parent=31 // pred_fallthru
          _
        // Predicated region
        $region45: #{tpu_custom_call.1} parent=31 // pred_check
          %p515 = pneg %p161
        $region46: #{tpu_custom_call.1} parent=31 // pred_check_branch
          %517 = sbr.rel (%p515) target = $region48
        $region47: #{tpu_custom_call.1} parent=31 // pred_region
          %s519 = ssub.s32 256, 256
          %520 = vsyncadd %s484, %s519
          %s521 = smul.addr %s35, 4
          %s522 = sadd.s32 %s36, %s521
          %s523 = smul.addr %s522, 64
          %s524 = scalar_lea.hbm %s4, %s523
          %s525 = sshll.u32 %s487, 4
          %s526 = int_to_ptr.vmem [resolvable:$true] %s525
          %531 = dma.vmem_to_hbm [thread:$0]  %s526, 256, %s524, %s484, 64, 64, 4
        $region48: #{tpu_custom_call.1} parent=31 // pred_fallthru
          _
        // Predicated region
        $region49: #{tpu_custom_call.1} parent=31 // pred_check
          %p532 = pneg %p189
        $region50: #{tpu_custom_call.1} parent=31 // pred_check_branch
          %534 = sbr.rel (%p532) target = $region52
        $region51: #{tpu_custom_call.1} parent=31 // pred_region
          %s536 = ssub.s32 256, 256
          %537 = vsyncadd %s489, %s536
          %s538 = smul.addr %s35, 4
          %s539 = sadd.s32 %s36, %s538
          %s540 = smul.addr %s539, 64
          %s541 = scalar_lea.hbm %s5, %s540
          %s542 = sshll.u32 %s492, 4
          %s543 = int_to_ptr.vmem [resolvable:$true] %s542
          %548 = dma.vmem_to_hbm [thread:$0]  %s543, 256, %s541, %s489, 64, 64, 4
        $region52: #{tpu_custom_call.1} parent=31 // pred_fallthru
          _
        // Predicated region
        $region53: #{tpu_custom_call.1} parent=31 // pred_check
          %p549 = pneg %p217
        $region54: #{tpu_custom_call.1} parent=31 // pred_check_branch
          %551 = sbr.rel (%p549) target = $region56
        $region55: #{tpu_custom_call.1} parent=31 // pred_region
          %s553 = ssub.s32 128, 128
          %554 = vsyncadd %s494, %s553
          %s555 = sadd.s32 %s36, %s35
          %s556 = smul.addr %s555, 128
          %s557 = scalar_lea.hbm %s6, %s556
          %s559 = sshll.u32 %s497, 4
          %s560 = int_to_ptr.vmem [resolvable:$true] %s559
          %562 = dma.vmem_to_hbm [thread:$0]  %s560, 128, %s557, %s494
        $region56: #{tpu_custom_call.1} parent=31 // pred_fallthru
          _
      $region32: #{tpu_custom_call.1} parent=5 // pred_fallthru
        _
      %p563 = scmp.le.s32.totalorder 2, %s26
      // Predicated region
      $region57: #{tpu_custom_call.1} parent=5 // pred_check
        %p564 = pneg %p563
      $region58: #{tpu_custom_call.1} parent=5 // pred_check_branch
        %566 = sbr.rel (%p564) target = $region60
      $region59: #{tpu_custom_call.1} parent=5 // pred_region
        %s567 = ssub.s32 %s26, 2
        // Predicated region
        $region61: #{tpu_custom_call.1} parent=59 // pred_check
          %p568 = pneg %p139
        $region62: #{tpu_custom_call.1} parent=59 // pred_check_branch
          %570 = sbr.rel (%p568) target = $region64
        $region63: #{tpu_custom_call.1} parent=59 // pred_region
          %s571 = sand.u32 %s124, 1
          %s572 = scalar_lea.sflag [#allocation4], %s571
          %s573 = sand.u32 %s124, 1
          %s574 = smul.addr %s573, 16
          %s575 = scalar_lea.vmem [#allocation7], %s574
          %576 = dma.done %s572, 256
        $region64: #{tpu_custom_call.1} parent=59 // pred_fallthru
          _
        // Predicated region
        $region65: #{tpu_custom_call.1} parent=59 // pred_check
          %p577 = pneg %p167
        $region66: #{tpu_custom_call.1} parent=59 // pred_check_branch
          %579 = sbr.rel (%p577) target = $region68
        $region67: #{tpu_custom_call.1} parent=59 // pred_region
          %s580 = sand.u32 %s32, 1
          %s581 = scalar_lea.sflag [#allocation9], %s580
          %s582 = sand.u32 %s152, 1
          %s583 = smul.addr %s582, 16
          %s584 = scalar_lea.vmem [#allocation8], %s583
          %585 = dma.done %s581, 256
        $region68: #{tpu_custom_call.1} parent=59 // pred_fallthru
          _
        // Predicated region
        $region69: #{tpu_custom_call.1} parent=59 // pred_check
          %p586 = pneg %p195
        $region70: #{tpu_custom_call.1} parent=59 // pred_check_branch
          %588 = sbr.rel (%p586) target = $region72
        $region71: #{tpu_custom_call.1} parent=59 // pred_region
          %s589 = sand.u32 %s32, 1
          %s590 = scalar_lea.sflag [#allocation9], %s589
          %s591 = sand.u32 %s180, 1
          %s592 = smul.addr %s591, 16
          %s593 = scalar_lea.vmem [#allocation10], %s592
          %594 = dma.done %s590, 256
        $region72: #{tpu_custom_call.1} parent=59 // pred_fallthru
          _
        // Predicated region
        $region73: #{tpu_custom_call.1} parent=59 // pred_check
          %p595 = pneg %p223
        $region74: #{tpu_custom_call.1} parent=59 // pred_check_branch
          %597 = sbr.rel (%p595) target = $region76
        $region75: #{tpu_custom_call.1} parent=59 // pred_region
          %s598 = sand.u32 %s208, 1
          %s599 = scalar_lea.sflag [#allocation12], %s598
          %s600 = sand.u32 %s208, 1
          %s601 = smul.addr %s600, 8
          %s602 = scalar_lea.vmem [#allocation11], %s601
          %603 = dma.done %s599, 128
        $region76: #{tpu_custom_call.1} parent=59 // pred_fallthru
          _
      $region60: #{tpu_custom_call.1} parent=5 // pred_fallthru
        _
    $region6: #{tpu_custom_call.1} parent=1 // loop_footer
      %s30 = sadd.s32 1, %s26
    $region7: #{tpu_custom_call.1} parent=1 // loop_footer_branch
      %25 = sbr.rel target = $region3
    $region8: #{tpu_custom_call.1} parent=1 // loop_exit
      _
    %604 = vsyncpa [#allocation3], 1
    %s605 = scalar_lea.sflag [#allocation3], 1
    %606 = vsyncpa %s605, 1
    %607 = vsyncpa [#allocation6], 1
    %608 = vsyncpa [#allocation4], 1
    %s609 = scalar_lea.sflag [#allocation4], 1
    %610 = vsyncpa %s609, 1
    %611 = vsyncpa [#allocation9], 1
    %s612 = scalar_lea.sflag [#allocation9], 1
    %613 = vsyncpa %s612, 1
    %614 = vsyncpa [#allocation12], 1
    %s615 = scalar_lea.sflag [#allocation12], 1
    %616 = vsyncpa %s615, 1

</llo_original>
